<compile_context>
chip_gen: v7x
topology: tpu7x:2x2x1
jax: 0.10.0
libtpu: 0.0.40
codegen_flags: <defaults>
</compile_context>

<pallas_src>
import functools

import numpy as np

import jax
import jax.numpy as jnp
from jax.experimental import pallas as pl
from jax.experimental.pallas import tpu as pltpu


# --------------------------------------------------------------------------- VMEM sizing
def _vmem_capacity_bytes():
    try:
        return int(pltpu.get_tpu_info().vmem_capacity_bytes)
    except Exception:
        return 64 * 1024 * 1024          # conservative default (v7x per-TC VMEM)


def _vmem_limit_bytes():
    # leave headroom for compiler-internal scratch; cap well below physical
    return min((_vmem_capacity_bytes() * 3) // 4, 96 * 1024 * 1024)


def _pick_batch_tile(N, per_img_bytes, budget_bytes):
    """Largest divisor TN of N whose working set fits the budget, keeping >=2 grid steps
    whenever N >= 2 (v7x megacore + DMA/compute pipelining)."""
    for tn in range(N, 0, -1):
        if N % tn:
            continue
        if tn * per_img_bytes > budget_bytes:
            continue
        if N >= 2 and N // tn < 2:
            continue
        return tn
    return 1


# ------------------------------------------------------------- width-folded (lane-dense)
def _width_selection_matrices(W, use_refl):
    """Static one-hot (W, W) matrices P_dx with P_dx[wi, wo] = 1 iff input column wi feeds
    output column wo through horizontal tap dx, with ReflectionPad2d(1)/ZeroPad2d(1)
    boundary handling folded in (reflection: col -1 -> 1, col W -> W-2; zeros: dropped)."""
    mats = []
    for dx in range(3):
        P = np.zeros((W, W), np.float32)
        for wo in range(W):
            wi = wo + dx - 1
            if wi < 0 or wi >= W:
                if not use_refl:
                    continue
                wi = -wi if wi < 0 else 2 * (W - 1) - wi
            P[wi, wo] += 1.0
        mats.append(P)
    return mats


def _build_banded_weight(w_oihw, W, use_refl):
    """(Cout, Cin, 3, 3) -> block-banded (3*W*Cin, W*Cout) matrix B with
    B[(dy*W + wi)*Cin + ci, wo*Cout + co] = sum_dx P_dx[wi, wo] * w[co, ci, dy, dx]."""
    wk = jnp.transpose(w_oihw, (2, 3, 1, 0)).astype(jnp.float32)   # (ky, kx, Cin, Cout)
    sel = _width_selection_matrices(W, use_refl)
    rows = []
    for dy in range(3):
        m = (jnp.kron(jnp.asarray(sel[0]), wk[dy, 0])
             + jnp.kron(jnp.asarray(sel[1]), wk[dy, 1])
             + jnp.kron(jnp.asarray(sel[2]), wk[dy, 2]))
        rows.append(m)
    return jnp.concatenate(rows, axis=0)                           # (3*W*Cin, W*Cout)


def _folded_kernel(x_ref, w_ref, b_ref, o_ref, *, TN, H, WCi, WCo, use_refl):
    """Single banded MXU matmul per block of TN images.

    x_ref: (TN, H, W*Cin)    bf16   (width folded into lanes)
    w_ref: (3*W*Cin, W*Cout) bf16   banded weight (dx taps + width padding folded in)
    b_ref: (1, W*Cout)       f32
    o_ref: (TN, H, W*Cout)   f32    (lane-dense full-width stores)
    """
    x = x_ref[...]
    if use_refl:
        top = x[:, 1:2, :]             # padded row -1 == row 1 (ReflectionPad2d(1))
        bot = x[:, H - 2:H - 1, :]     # padded row  H == row H-2
    else:
        top = jnp.zeros((TN, 1, WCi), x.dtype)
        bot = top
    up = jnp.concatenate([top, x[:, :H - 1, :]], axis=1)      # dy=0 tap: input row h-1
    down = jnp.concatenate([x[:, 1:, :], bot], axis=1)        # dy=2 tap: input row h+1
    slab = jnp.concatenate([up, x, down], axis=-1)            # (TN, H, 3*W*Cin)
    acc = jnp.dot(slab.reshape(TN * H, 3 * WCi), w_ref[...],
                  preferred_element_type=jnp.float32)         # one MXU matmul, f32 acc
    acc = acc + b_ref[...]
    o_ref[...] = acc.reshape(TN, H, WCo).astype(o_ref.dtype)


def _conv3x3_width_folded(x_nchw, w_oihw, b, *, use_refl):
    N, Cin, H, W = x_nchw.shape
    Cout = w_oihw.shape[0]
    WCi, WCo = W * Cin, W * Cout

    # layout glue: NCHW -> (N, H, W*Cin); bf16 operands, f32 accumulate in-kernel
    x = jnp.transpose(x_nchw, (0, 2, 3, 1)).reshape(N, H, WCi).astype(jnp.bfloat16)
    wb = _build_banded_weight(w_oihw, W, use_refl).astype(jnp.bfloat16)   # (3*WCi, WCo)
    b_row = jnp.tile(b.astype(jnp.float32), W).reshape(1, WCo)            # b[co] at w*Cout+co

    vmem_limit = _vmem_limit_bytes()
    per_img = (4 * H * WCi * 2          # x (double-buffered) + up/down copies (bf16)
               + 3 * H * WCi * 2        # concatenated slab (bf16)
               + 3 * H * WCo * 4)       # f32 matmul result + double-buffered output tile
    budget = vmem_limit // 2 - 4 * (3 * WCi * WCo * 2)
    TN = _pick_batch_tile(N, per_img, budget)

    kernel = functools.partial(_folded_kernel, TN=TN, H=H, WCi=WCi, WCo=WCo,
                               use_refl=use_refl)

    flops = 2 * N * H * (3 * WCi) * WCo
    bytes_accessed = (N * H * WCi * 2 + 3 * WCi * WCo * 2 + WCo * 4 + N * H * WCo * 4)

    out = pl.pallas_call(
        kernel,
        out_shape=jax.ShapeDtypeStruct((N, H, WCo), jnp.float32),
        grid=(N // TN,),
        in_specs=[
            pl.BlockSpec((TN, H, WCi), lambda i: (i, 0, 0)),
            pl.BlockSpec((3 * WCi, WCo), lambda i: (0, 0)),
            pl.BlockSpec((1, WCo), lambda i: (0, 0)),
        ],
        out_specs=pl.BlockSpec((TN, H, WCo), lambda i: (i, 0, 0)),
        compiler_params=pltpu.CompilerParams(
            dimension_semantics=("parallel",), vmem_limit_bytes=vmem_limit),
        cost_estimate=pl.CostEstimate(flops=flops, transcendentals=0,
                                      bytes_accessed=bytes_accessed),
    )(x, wb, b_row)

    return jnp.transpose(out.reshape(N, H, W, Cout), (0, 3, 1, 2))        # -> NCHW


# --------------------------------------------------- channel-minor fallback (large W*C)
def _channel_minor_kernel(x_ref, w_ref, b_ref, o_ref, *, TN, H, W, Cin, Cout, use_refl):
    """Pad(1) + 3x3 conv via im2col-in-K; used when width folding is too large."""
    x = x_ref[...]
    if use_refl:
        top, bot = x[:, 1:2], x[:, H - 2:H - 1]
    else:
        top = jnp.zeros((TN, 1, W, Cin), x.dtype)
        bot = top
    xp = jnp.concatenate([top, x, bot], axis=1)                  # (TN, H+2, W, Cin)
    if use_refl:
        left, right = xp[:, :, 1:2], xp[:, :, W - 2:W - 1]
    else:
        left = jnp.zeros((TN, H + 2, 1, Cin), x.dtype)
        right = left
    xp = jnp.concatenate([left, xp, right], axis=2)              # (TN, H+2, W+2, Cin)

    # accumulator initialised from the bias broadcast (no separate zero-fill + bias pass)
    acc = jnp.broadcast_to(b_ref[...], (TN * H * W, Cout)).astype(jnp.float32)
    for dy in range(3):
        slab = jnp.concatenate(
            [xp[:, dy:dy + H, dx:dx + W, :] for dx in range(3)], axis=-1
        ).reshape(TN * H * W, 3 * Cin)
        acc = acc + jnp.dot(slab, w_ref[dy], preferred_element_type=jnp.float32)
    o_ref[...] = acc.reshape(TN, H, W, Cout).astype(o_ref.dtype)


def _conv3x3_channel_minor(x_nchw, w_oihw, b, *, use_refl):
    # TODO(synk): add an H-row tiling path (1-row halo) so very large H*W*C images do not
    #             require a whole-image VMEM block.
    N, Cin, H, W = x_nchw.shape
    Cout = w_oihw.shape[0]

    x = jnp.transpose(x_nchw, (0, 2, 3, 1)).astype(jnp.bfloat16)                  # NHWC
    w = jnp.transpose(w_oihw, (2, 3, 1, 0)).reshape(3, 3 * Cin, Cout).astype(jnp.bfloat16)
    b2 = b.reshape(1, Cout).astype(jnp.float32)

    vmem_limit = _vmem_limit_bytes()
    per_img = (2 * H * W * Cin * 2 + (H + 2) * (W + 2) * Cin * 2
               + 3 * H * W * 3 * Cin * 2 + H * W * Cout * 4 + 2 * H * W * Cout * 4)
    TN = _pick_batch_tile(N, per_img, vmem_limit // 2)

    kernel = functools.partial(_channel_minor_kernel, TN=TN, H=H, W=W, Cin=Cin,
                               Cout=Cout, use_refl=use_refl)

    flops = 2 * N * H * W * 9 * Cin * Cout
    bytes_accessed = N * H * W * Cin * 2 + 9 * Cin * Cout * 2 + Cout * 4 + N * H * W * Cout * 4

    out = pl.pallas_call(
        kernel,
        out_shape=jax.ShapeDtypeStruct((N, H, W, Cout), jnp.float32),
        grid=(N // TN,),
        in_specs=[
            pl.BlockSpec((TN, H, W, Cin), lambda i: (i, 0, 0, 0)),
            pl.BlockSpec((3, 3 * Cin, Cout), lambda i: (0, 0, 0)),
            pl.BlockSpec((1, Cout), lambda i: (0, 0)),
        ],
        out_specs=pl.BlockSpec((TN, H, W, Cout), lambda i: (i, 0, 0, 0)),
        compiler_params=pltpu.CompilerParams(
            dimension_semantics=("parallel",), vmem_limit_bytes=vmem_limit),
        cost_estimate=pl.CostEstimate(flops=flops, transcendentals=0,
                                      bytes_accessed=bytes_accessed),
    )(x, w, b2)

    return jnp.transpose(out, (0, 3, 1, 2))                                       # -> NCHW


# ------------------------------------------------------------------------------ dispatch
def conv3x3(x_nchw, w_oihw, b, *, use_refl=True):
    """PyTorch Conv3x3.forward: pad(1) (reflection / zero) + Conv2d(Cin, Cout, 3).

    x_nchw: (N, Cin, H, W) f32, w_oihw: (Cout, Cin, 3, 3) f32, b: (Cout,) f32
    returns (N, Cout, H, W) f32.
    """
    N, Cin, H, W = x_nchw.shape
    Cout = w_oihw.shape[0]
    if use_refl:
        assert H >= 2 and W >= 2, "ReflectionPad2d(1) requires H, W >= 2"

    # width-folded lane-dense path for small W*C (banded weight is (3*W*Cin, W*Cout))
    if W * Cin <= 512 and W * Cout <= 512:
        return _conv3x3_width_folded(x_nchw, w_oihw, b, use_refl=use_refl)
    return _conv3x3_channel_minor(x_nchw, w_oihw, b, use_refl=use_refl)


# ----------------------------------------------------------------------------- reference
def _reference(x_nchw, w_oihw, b, use_refl=True):
    mode = "reflect" if use_refl else "constant"
    xp = jnp.pad(x_nchw, ((0, 0), (0, 0), (1, 1), (1, 1)), mode=mode)
    y = jax.lax.conv_general_dilated(
        xp, w_oihw, window_strides=(1, 1), padding="VALID",
        dimension_numbers=("NCHW", "OIHW", "NCHW"),
        precision=jax.lax.Precision.HIGHEST)
    return y + b.reshape(1, -1, 1, 1)


if __name__ == "__main__":
    key = jax.random.PRNGKey(0)
    kx, kw, kb = jax.random.split(key, 3)

    # small shapes consistent with the module: batch=2, in_channels=4, out_channels=8, 16x16
    N, Cin, Cout, H, W = 2, 4, 8, 16, 16
    x = jax.random.normal(kx, (N, Cin, H, W), jnp.float32)
    w = jax.random.normal(kw, (Cout, Cin, 3, 3), jnp.float32) / jnp.sqrt(9.0 * Cin)
    b = 0.1 * jax.random.normal(kb, (Cout,), jnp.float32)

    # reflection-pad path (module default)
    out = jax.jit(conv3x3)(x, w, b)
    jax.block_until_ready(out)
    assert out.shape == (N, Cout, H, W) and out.dtype == jnp.float32
    assert bool(jnp.all(jnp.isfinite(out)))
    ref = _reference(x, w, b, use_refl=True)
    err = float(jnp.max(jnp.abs(out - ref)))
    assert bool(jnp.allclose(out, ref, atol=5e-2, rtol=5e-2)), err   # bf16 operands, f32 acc

    # zero-pad path (use_refl=False)
    out_z = jax.jit(functools.partial(conv3x3, use_refl=False))(x, w, b)
    jax.block_until_ready(out_z)
    ref_z = _reference(x, w, b, use_refl=False)
    err_z = float(jnp.max(jnp.abs(out_z - ref_z)))
    assert bool(jnp.allclose(out_z, ref_z, atol=5e-2, rtol=5e-2)), err_z

    print("KERNEL_OK")
</pallas_src>

<mosaic_0001>
module attributes {stable_mosaic.version = 11 : i64} {
  func.func @_folded_kernel(%arg0: i32, %arg1: memref<1x16x64xbf16, #tpu.memory_space<vmem>>, %arg2: memref<192x128xbf16, #tpu.memory_space<vmem>>, %arg3: memref<1x128xf32, #tpu.memory_space<vmem>>, %arg4: memref<1x16x128xf32, #tpu.memory_space<vmem>>) attributes {dimension_semantics = [#tpu.dimension_semantics<parallel>], iteration_bounds = array<i64: 2>, scalar_prefetch = 0 : i64, scratch_operands = 0 : i64, tpu.core_type = #tpu.core_type<tc>, window_params = [{transform_indices = @transform_0, window_bounds = array<i64: 1, 16, 64>}, {pipeline_mode = #tpu.pipeline_mode<synchronous>, transform_indices = @transform_1, window_bounds = array<i64: 192, 128>}, {pipeline_mode = #tpu.pipeline_mode<synchronous>, transform_indices = @transform_2, window_bounds = array<i64: 1, 128>}, {transform_indices = @transform_3, window_bounds = array<i64: 1, 16, 128>}]} {
    %c0 = arith.constant 0 : index
    %c0_0 = arith.constant 0 : index
    %c0_1 = arith.constant 0 : index
    %0 = vector.load %arg1[%c0, %c0_0, %c0_1] : memref<1x16x64xbf16, #tpu.memory_space<vmem>>, vector<1x16x64xbf16>
    %1 = vector.extract_strided_slice %0 {offsets = [0, 1, 0], sizes = [1, 1, 64], strides = [1, 1, 1]} : vector<1x16x64xbf16> to vector<1x1x64xbf16>
    %2 = vector.extract_strided_slice %0 {offsets = [0, 14, 0], sizes = [1, 1, 64], strides = [1, 1, 1]} : vector<1x16x64xbf16> to vector<1x1x64xbf16>
    %3 = vector.extract_strided_slice %0 {offsets = [0, 0, 0], sizes = [1, 15, 64], strides = [1, 1, 1]} : vector<1x16x64xbf16> to vector<1x15x64xbf16>
    %4 = tpu.concatenate %1, %3 in 1 : vector<1x1x64xbf16>, vector<1x15x64xbf16> -> vector<1x16x64xbf16>
    %5 = vector.extract_strided_slice %0 {offsets = [0, 1, 0], sizes = [1, 15, 64], strides = [1, 1, 1]} : vector<1x16x64xbf16> to vector<1x15x64xbf16>
    %6 = tpu.concatenate %5, %2 in 1 : vector<1x15x64xbf16>, vector<1x1x64xbf16> -> vector<1x16x64xbf16>
    %7 = tpu.concatenate %4, %0, %6 in 2 : vector<1x16x64xbf16>, vector<1x16x64xbf16>, vector<1x16x64xbf16> -> vector<1x16x192xbf16>
    %8 = vector.shape_cast %7 : vector<1x16x192xbf16> to vector<16x192xbf16>
    %c0_2 = arith.constant 0 : index
    %c0_3 = arith.constant 0 : index
    %9 = vector.load %arg2[%c0_2, %c0_3] : memref<192x128xbf16, #tpu.memory_space<vmem>>, vector<192x128xbf16>
    %cst = arith.constant dense<0.000000e+00> : vector<16x128xf32>
    %10 = tpu.matmul %8, %9, %cst {dimension_numbers = #tpu.dot_dimension_numbers<[1], [0], [0], [1], [0, 0, 1, 1], [], []>} : vector<16x192xbf16>, vector<192x128xbf16>, vector<16x128xf32> -> vector<16x128xf32>
    %c0_4 = arith.constant 0 : index
    %c0_5 = arith.constant 0 : index
    %11 = vector.load %arg3[%c0_4, %c0_5] : memref<1x128xf32, #tpu.memory_space<vmem>>, vector<1x128xf32>
    %12 = vector.broadcast %11 : vector<1x128xf32> to vector<16x128xf32>
    %13 = arith.addf %10, %12 : vector<16x128xf32>
    %14 = vector.shape_cast %13 : vector<16x128xf32> to vector<1x16x128xf32>
    %c0_6 = arith.constant 0 : index
    %c0_7 = arith.constant 0 : index
    %c0_8 = arith.constant 0 : index
    %15 = vector.load %arg4[%c0_6, %c0_7, %c0_8] : memref<1x16x128xf32, #tpu.memory_space<vmem>>, vector<1x16x128xf32>
    tpu.vector_store %arg4[%c0_6, %c0_7, %c0_8], %14 {strides = array<i32>} : memref<1x16x128xf32, #tpu.memory_space<vmem>>, vector<1x16x128xf32>,
    return
  }
  func.func @transform_0(%arg0: i32) -> (i32, i32, i32) {
    %c0_i32 = arith.constant 0 : i32
    %c0_i32_0 = arith.constant 0 : i32
    %c0_i32_1 = arith.constant 0 : i32
    return %arg0, %c0_i32, %c0_i32_0 : i32, i32, i32
  }
  func.func @transform_1(%arg0: i32) -> (i32, i32) {
    %c0_i32 = arith.constant 0 : i32
    %c0_i32_0 = arith.constant 0 : i32
    %c0_i32_1 = arith.constant 0 : i32
    return %c0_i32, %c0_i32_0 : i32, i32
  }
  func.func @transform_2(%arg0: i32) -> (i32, i32) {
    %c0_i32 = arith.constant 0 : i32
    %c0_i32_0 = arith.constant 0 : i32
    %c0_i32_1 = arith.constant 0 : i32
    return %c0_i32, %c0_i32_0 : i32, i32
  }
  func.func @transform_3(%arg0: i32) -> (i32, i32, i32) {
    %c0_i32 = arith.constant 0 : i32
    %c0_i32_0 = arith.constant 0 : i32
    %c0_i32_1 = arith.constant 0 : i32
    return %arg0, %c0_i32, %c0_i32_0 : i32, i32, i32
  }
}

</mosaic_0001>

<llo_original>
// kernel: tile.8
$region0: #{tile.8}
  #allocation0 [shape = 's32[1]{0}', space=sflag, size = 0x4, scoped, tag = 'scoped memory for tile.8']
  %s0 = inlined_call_operand.vmem [shape: f32[8], index: 0, kind: input, shape index: {}]
  %s1 = inlined_call_operand.vmem [shape: f32[16,8], index: 1, kind: output, shape index: {}]
  // Predicated region
  $region2: #{tile.8} parent=0 // pred_check
    _
  $region3: #{tile.8} parent=0 // pred_check_branch
    %3 = sbr.rel (0) target = $region5
  $region4: #{tile.8} parent=0 // pred_region
    _
  $region5: #{tile.8} parent=0 // pred_fallthru
    _
  %v4 = vld [vmem:[%s0] ss:$0 sm:$0xff]
  %5 = vst [vmem:[%s1] sm:$0xff] %v4
  %s6 = scalar_lea.vmem %s1, 8
  %7 = vst [vmem:[%s6] sm:$0xff] %v4

// kernel: tile.9
$region0: #{tile.9}
  %s0 = inlined_call_operand.vmem [shape: f32[16,8], index: 0, kind: input, shape index: {}]
  %s1 = inlined_call_operand.vmem [shape: f32[1,128], index: 1, kind: output, shape index: {}]
  $region1: #{tile.9} parent=0
    #allocation0 [shape = 'u8[4096]{0}', space=vmem, size = 0x1000, scoped, tag = 'scoped mem for output reshape']
    %v2 = vld [vmem:[%s0] sm:$0x1]
    %vm3 = vcmask 64512
    %4 = vst.msk [vmem:[#allocation0] sm:$0x1] %vm3, %v2
    %s5 = scalar_lea.vmem %s0, 15
    %v6 = vld [vmem:[%s5] sm:$0x1]
    %7 = vrot.lane.b32.xlu0 %v6, 120
    %v8 = vpop.permute.xlu0 %7
    %vm9 = vcmask 1048512
    %10 = vst.msk [vmem:[#allocation0] sm:$0x1] %vm9, %v8
    %s11 = scalar_lea.vmem %s0, 14
    %v12 = vld [vmem:[%s11] sm:$0x1]
    %13 = vrot.lane.b32.xlu0 %v12, 112
    %v14 = vpop.permute.xlu0 %13
    %vm15 = vcmask 982912
    %16 = vst.msk [vmem:[#allocation0] sm:$0x1] %vm15, %v14
    %s17 = scalar_lea.vmem %s0, 13
    %v18 = vld [vmem:[%s17] sm:$0x1]
    %19 = vrot.lane.b32.xlu0 %v18, 104
    %v20 = vpop.permute.xlu0 %19
    %vm21 = vcmask 917312
    %22 = vst.msk [vmem:[#allocation0] sm:$0x1] %vm21, %v20
    %s23 = scalar_lea.vmem %s0, 12
    %v24 = vld [vmem:[%s23] sm:$0x1]
    %25 = vrot.lane.b32.xlu0 %v24, 96
    %v26 = vpop.permute.xlu0 %25
    %vm27 = vcmask 851712
    %28 = vst.msk [vmem:[#allocation0] sm:$0x1] %vm27, %v26
    %s29 = scalar_lea.vmem %s0, 11
    %v30 = vld [vmem:[%s29] sm:$0x1]
    %31 = vrot.lane.b32.xlu0 %v30, 88
    %v32 = vpop.permute.xlu0 %31
    %vm33 = vcmask 786112
    %34 = vst.msk [vmem:[#allocation0] sm:$0x1] %vm33, %v32
    %s35 = scalar_lea.vmem %s0, 10
    %v36 = vld [vmem:[%s35] sm:$0x1]
    %37 = vrot.lane.b32.xlu0 %v36, 80
    %v38 = vpop.permute.xlu0 %37
    %vm39 = vcmask 720512
    %40 = vst.msk [vmem:[#allocation0] sm:$0x1] %vm39, %v38
    %s41 = scalar_lea.vmem %s0, 9
    %v42 = vld [vmem:[%s41] sm:$0x1]
    %43 = vrot.lane.b32.xlu0 %v42, 72
    %v44 = vpop.permute.xlu0 %43
    %vm45 = vcmask 654912
    %46 = vst.msk [vmem:[#allocation0] sm:$0x1] %vm45, %v44
    %s47 = scalar_lea.vmem %s0, 8
    %v48 = vld [vmem:[%s47] sm:$0x1]
    %49 = vrot.lane.b32.xlu0 %v48, 64
    %v50 = vpop.permute.xlu0 %49
    %vm51 = vcmask 589312
    %52 = vst.msk [vmem:[#allocation0] sm:$0x1] %vm51, %v50
    %s53 = scalar_lea.vmem %s0, 7
    %v54 = vld [vmem:[%s53] sm:$0x1]
    %55 = vrot.lane.b32.xlu0 %v54, 56
    %v56 = vpop.permute.xlu0 %55
    %vm57 = vcmask 523712
    %58 = vst.msk [vmem:[#allocation0] sm:$0x1] %vm57, %v56
    %s59 = scalar_lea.vmem %s0, 6
    %v60 = vld [vmem:[%s59] sm:$0x1]
    %61 = vrot.lane.b32.xlu0 %v60, 48
    %v62 = vpop.permute.xlu0 %61
    %vm63 = vcmask 458112
    %64 = vst.msk [vmem:[#allocation0] sm:$0x1] %vm63, %v62
    %s65 = scalar_lea.vmem %s0, 5
    %v66 = vld [vmem:[%s65] sm:$0x1]
    %67 = vrot.lane.b32.xlu0 %v66, 40
    %v68 = vpop.permute.xlu0 %67
    %vm69 = vcmask 392512
    %70 = vst.msk [vmem:[#allocation0] sm:$0x1] %vm69, %v68
    %s71 = scalar_lea.vmem %s0, 4
    %v72 = vld [vmem:[%s71] sm:$0x1]
    %73 = vrot.lane.b32.xlu0 %v72, 32
    %v74 = vpop.permute.xlu0 %73
    %vm75 = vcmask 326912
    %76 = vst.msk [vmem:[#allocation0] sm:$0x1] %vm75, %v74
    %s77 = scalar_lea.vmem %s0, 3
    %v78 = vld [vmem:[%s77] sm:$0x1]
    %79 = vrot.lane.b32.xlu0 %v78, 24
    %v80 = vpop.permute.xlu0 %79
    %vm81 = vcmask 261312
    %82 = vst.msk [vmem:[#allocation0] sm:$0x1] %vm81, %v80
    %s83 = scalar_lea.vmem %s0, 2
    %v84 = vld [vmem:[%s83] sm:$0x1]
    %85 = vrot.lane.b32.xlu0 %v84, 16
    %v86 = vpop.permute.xlu0 %85
    %vm87 = vcmask 195712
    %88 = vst.msk [vmem:[#allocation0] sm:$0x1] %vm87, %v86
    %s89 = scalar_lea.vmem %s0, 1
    %v90 = vld [vmem:[%s89] sm:$0x1]
    %91 = vrot.lane.b32.xlu0 %v90, 8
    %v92 = vpop.permute.xlu0 %91
    %vm93 = vcmask 130112
    %94 = vst.msk [vmem:[#allocation0] sm:$0x1] %vm93, %v92
    %s96 = sshllo.u32 0, 1
    %v98 = vld [vmem:[#allocation0] sm:%s96]
    %s99 = sshllo.u32 0, 1
    %100 = vst [vmem:[%s1] sm:%s99] %v98

// kernel: conv3x3.1
$region0: #{conv3x3.1}
  #allocation0 [shape = 'u32[]', space=smem, size = 0x4, offset = 0x4, fixed_abs, tag = 'smem constant byte address 0x4 - core index']
  #allocation1 [shape = 'u32[144,128]{1,0:T(1,128)}', space=vmem, size = 0x12000, scoped, tag = 'internal scratch']
  %s0 = inlined_call_operand.vmem [shape: bf16[2,16,64], index: 0, kind: input, shape index: {}]
  %s1 = inlined_call_operand.vmem [shape: bf16[192,128], index: 1, kind: input, shape index: {}]
  %s2 = inlined_call_operand.vmem [shape: f32[1,128], index: 2, kind: input, shape index: {}]
  %s3 = inlined_call_operand.vmem [shape: f32[2,16,128], index: 3, kind: output, shape index: {}]
  %s4 = sld [smem:[#allocation0]]
  $region45: #{conv3x3.1} parent=0
    _
  %s6 = ssub.s32 1, %s4
  %s7 = scalar_select 0, %s6, %s4
  loop: start=0, step=1, limit=4
  $region2: #{conv3x3.1} parent=0 // loop_pre_header
    _
  $region3: #{conv3x3.1} parent=0 // loop_header
    %s9 = sphi 0, %s13
    %p10 = scmp.ge.s32.totalorder %s9, 4
    %s19 = sphi 0, %s21
    %s22 = sphi 0, %s19
    %s23 = sphi 0, %s22
    %s39 = sphi 0, %s23
    %s43 = sphi 0, %s43
    %s45 = sphi 0, %s43
    %s46 = sphi 0, %s45
    %s60 = sphi 0, %s46
    %s64 = sphi 0, %s64
    %s66 = sphi 0, %s64
    %s67 = sphi 0, %s66
    %s81 = sphi 0, %s67
    %s87 = sphi 0, %s89
    %s90 = sphi 0, %s87
    %s91 = sphi 0, %s90
    %s107 = sphi 0, %s91
  $region4: #{conv3x3.1} parent=0 // loop_header_branch
    %12 = sbr.rel (%p10) target = $region8
  $region5: #{conv3x3.1} parent=0 // loop_body
    %s14 = ssub.s32 %s9, 1
    %s15 = ssub.s32 %s9, 2
    %s16 = sadd.s32 %s9, 1
    %s17 = ssub.s32 %s9, %s16
    %p18 = scmp.eq.s32.totalorder %s17, 0
    %s20 = sadd.s32 %s19, 1
    %s21 = scalar_select %p18, %s19, %s20
    %p24 = pneg %p18
    %p25 = scmp.eq.s32.totalorder %s9, 1
    %p26 = por %p24, %p25
    %p27 = scmp.ne.s32.totalorder %s19, %s22
    %p28 = scmp.eq.s32.totalorder %s9, 0
    %p29 = por %p27, %p28
    %p30 = scmp.ne.s32.totalorder %s19, %s22
    %p31 = scmp.eq.s32.totalorder %s14, 1
    %p32 = por %p30, %p31
    %p33 = scmp.ne.s32.totalorder %s22, %s23
    %p34 = scmp.eq.s32.totalorder %s14, 0
    %p35 = por %p33, %p34
    %p36 = scmp.ne.s32.totalorder %s22, %s23
    %p37 = scmp.eq.s32.totalorder %s15, 1
    %p38 = por %p36, %p37
    %p40 = scmp.ne.s32.totalorder %s23, %s39
    %p41 = scmp.eq.s32.totalorder %s15, 0
    %p42 = por %p40, %p41
    %s44 = sadd.s32 %s43, 1
    %p47 = scmp.eq.s32.totalorder %s9, 1
    %p48 = scmp.ne.s32.totalorder %s43, %s45
    %p49 = scmp.eq.s32.totalorder %s9, 0
    %p50 = por %p48, %p49
    %p51 = scmp.ne.s32.totalorder %s43, %s45
    %p52 = scmp.eq.s32.totalorder %s14, 1
    %p53 = por %p51, %p52
    %p54 = scmp.ne.s32.totalorder %s45, %s46
    %p55 = scmp.eq.s32.totalorder %s14, 0
    %p56 = por %p54, %p55
    %p57 = scmp.ne.s32.totalorder %s45, %s46
    %p58 = scmp.eq.s32.totalorder %s15, 1
    %p59 = por %p57, %p58
    %p61 = scmp.ne.s32.totalorder %s46, %s60
    %p62 = scmp.eq.s32.totalorder %s15, 0
    %p63 = por %p61, %p62
    %s65 = sadd.s32 %s64, 1
    %p68 = scmp.eq.s32.totalorder %s9, 1
    %p69 = scmp.ne.s32.totalorder %s64, %s66
    %p70 = scmp.eq.s32.totalorder %s9, 0
    %p71 = por %p69, %p70
    %p72 = scmp.ne.s32.totalorder %s64, %s66
    %p73 = scmp.eq.s32.totalorder %s14, 1
    %p74 = por %p72, %p73
    %p75 = scmp.ne.s32.totalorder %s66, %s67
    %p76 = scmp.eq.s32.totalorder %s14, 0
    %p77 = por %p75, %p76
    %p78 = scmp.ne.s32.totalorder %s66, %s67
    %p79 = scmp.eq.s32.totalorder %s15, 1
    %p80 = por %p78, %p79
    %p82 = scmp.ne.s32.totalorder %s67, %s81
    %p83 = scmp.eq.s32.totalorder %s15, 0
    %p84 = por %p82, %p83
    %s85 = ssub.s32 %s9, %s16
    %p86 = scmp.eq.s32.totalorder %s85, 0
    %s88 = sadd.s32 %s87, 1
    %s89 = scalar_select %p86, %s87, %s88
    %p92 = pneg %p86
    %p93 = scmp.eq.s32.totalorder %s9, 1
    %p94 = por %p92, %p93
    %p95 = scmp.ne.s32.totalorder %s87, %s90
    %p96 = scmp.eq.s32.totalorder %s9, 0
    %p97 = por %p95, %p96
    %p98 = scmp.ne.s32.totalorder %s87, %s90
    %p99 = scmp.eq.s32.totalorder %s14, 1
    %p100 = por %p98, %p99
    %p101 = scmp.ne.s32.totalorder %s90, %s91
    %p102 = scmp.eq.s32.totalorder %s14, 0
    %p103 = por %p101, %p102
    %p104 = scmp.ne.s32.totalorder %s90, %s91
    %p105 = scmp.eq.s32.totalorder %s15, 1
    %p106 = por %p104, %p105
    %p108 = scmp.ne.s32.totalorder %s91, %s107
    %p109 = scmp.eq.s32.totalorder %s15, 0
    %p110 = por %p108, %p109
    %p111 = scmp.le.s32.totalorder 1, %s9
    %p112 = scmp.lt.s32.totalorder %s9, 3
    %p113 = pnand %p111, %p112
    %p114 = pneg %p113
    // Predicated region
    $region9: #{conv3x3.1} parent=5 // pred_check
      _
    $region10: #{conv3x3.1} parent=5 // pred_check_branch
      %116 = sbr.rel (%p113) target = $region12
    $region11: #{conv3x3.1} parent=5 // pred_region
      %s117 = ssub.s32 %s9, 1
      // Predicated region
      $region13: #{conv3x3.1} parent=11 // pred_check
        %p118 = pneg %p56
      $region14: #{conv3x3.1} parent=11 // pred_check_branch
        %120 = sbr.rel (%p118) target = $region16
      $region15: #{conv3x3.1} parent=11 // pred_region
        _
      $region16: #{conv3x3.1} parent=11 // pred_fallthru
        _
      // Predicated region
      $region17: #{conv3x3.1} parent=11 // pred_check
        %p121 = pneg %p77
      $region18: #{conv3x3.1} parent=11 // pred_check_branch
        %123 = sbr.rel (%p121) target = $region20
      $region19: #{conv3x3.1} parent=11 // pred_region
        _
      $region20: #{conv3x3.1} parent=11 // pred_fallthru
        _
    $region12: #{conv3x3.1} parent=5 // pred_fallthru
      _
    %p124 = scmp.lt.s32.totalorder %s9, 2
    // Predicated region
    $region21: #{conv3x3.1} parent=5 // pred_check
      %p125 = pneg %p124
    $region22: #{conv3x3.1} parent=5 // pred_check_branch
      %127 = sbr.rel (%p125) target = $region24
    $region23: #{conv3x3.1} parent=5 // pred_region
      // Predicated region
      $region25: #{conv3x3.1} parent=23 // pred_check
        %p128 = pneg %p29
      $region26: #{conv3x3.1} parent=23 // pred_check_branch
        %130 = sbr.rel (%p128) target = $region28
      $region27: #{conv3x3.1} parent=23 // pred_region
        %p131 = scmp.lt.s32.totalorder %s9, 1
        %s132 = scalar_select %p131, %s9, 1
        %s133 = smul.addr %s132, 2
        %s134 = smul.addr %s133, 4
        %s135 = scalar_lea.vmem %s0, %s134
      $region28: #{conv3x3.1} parent=23 // pred_fallthru
        _
    $region24: #{conv3x3.1} parent=5 // pred_fallthru
      _
    %p136 = scmp.le.s32.totalorder 1, %s9
    %p137 = scmp.lt.s32.totalorder %s9, 3
    %p138 = pnand %p136, %p137
    %p139 = pneg %p138
    // Predicated region
    $region29: #{conv3x3.1} parent=5 // pred_check
      _
    $region30: #{conv3x3.1} parent=5 // pred_check_branch
      %141 = sbr.rel (%p138) target = $region32
    $region31: #{conv3x3.1} parent=5 // pred_region
      %s142 = ssub.s32 %s9, 1
      %p143 = scmp.lt.s32.totalorder %s14, 1
      %s144 = scalar_select %p143, %s14, 1
      %s145 = smul.addr %s144, 2
      %s146 = smul.addr %s145, 4
      %s147 = scalar_lea.vmem %s0, %s146
      %p148 = pneg %p35
      %p149 = pneg %p32
      %p150 = pneg %p56
      %p151 = pneg %p53
      %p152 = pneg %p77
      %p153 = pneg %p74
      %p154 = pneg %p103
      %p155 = pneg %p100
      %p156 = scmp.lt.s32.totalorder %s14, 1
      %s157 = scalar_select %p156, %s14, 1
      %s158 = smul.addr %s157, 2
      %s159 = smul.addr %s158, 8
      %s160 = scalar_lea.vmem %s3, %s159
      %p161 = scmp.lt.s32.totalorder %s14, 1
      %s162 = scalar_select %p161, %s14, 1
      %s163 = smul.addr %s162, 2
      %s164 = smul.addr %s163, 4
      %s165 = scalar_lea.vmem %s0, %s164
      %p166 = scmp.lt.s32.totalorder %s14, 1
      %s167 = scalar_select %p166, %s14, 1
      %s168 = smul.addr %s167, 2
      %s169 = smul.addr %s168, 8
      %s170 = scalar_lea.vmem %s3, %s169
      %v172 = vld [vmem:[%s165] sm:$0xf]
      %v173 = vld [vmem:[%s165 + $0x4] sm:$0xf]
      %v175 = vunpack.c.l.b16 %v172
      %v176 = vpack.c.b16 %v175, %v175
      %v178 = vshrl.u32 %v176, 16
      %v182 = vunpack.c.l.b16 %v173
      %v183 = vpack.c.b16 %v182, %v175
      %v185 = vshrl.u32 %v183, 16
      %v187 = vrot.slane %v185, 7
      %v188 = vshll.u32 %v183, 16
      %v190 = vor.u32 %v187, %v188
      %vm192 = vcmask 1040384
      %vm193 = vsmask.f32 256
      %vm194 = vmand %vm192, %vm193
      %v195 = vsel %vm194, %v178, %v190
      %v196 = vrot.slane %v188, 1
      %v197 = vor.u32 %v185, %v196
      %v199 = vpack.c.b16 %v182, %v182
      %v201 = vshll.u32 %v199, 16
      %v203 = vrot.slane %v201, 4
      %vm205 = vcmask 1047552
      %vm206 = vsmask.f32 7424
      %vm207 = vmand %vm205, %vm206
      %v208 = vsel %vm207, %v197, %v203
      %209 = vrot.lane.b32.xlu0 %v183, 64
      %v210 = vpop.permute.xlu0 %209
      %vm211 = vcmask 523264
      %v214 = vsel %vm211, %v195, %v210
      %v216 = vld [vmem:[%s1] sm:$0xf]
      %v217 = vld [vmem:[%s1 + $0x4] sm:$0xf]
      %v218 = vld [vmem:[%s1 + $0x8] sm:$0xf]
      %v219 = vld [vmem:[%s1 + $0xc] sm:$0xf]
      %v220 = vld [vmem:[%s1 + $0x10] sm:$0xf]
      %v221 = vld [vmem:[%s1 + $0x14] sm:$0xf]
      %v222 = vld [vmem:[%s1 + $0x18] sm:$0xf]
      %v223 = vld [vmem:[%s1 + $0x1c] sm:$0xf]
      %v224 = vld [vmem:[%s1 + $0x20] sm:$0xf]
      %v225 = vld [vmem:[%s1 + $0x24] sm:$0xf]
      %v226 = vld [vmem:[%s1 + $0x28] sm:$0xf]
      %v227 = vld [vmem:[%s1 + $0x2c] sm:$0xf]
      %v228 = vld [vmem:[%s1 + $0x30] sm:$0xf]
      %v229 = vld [vmem:[%s1 + $0x34] sm:$0xf]
      %v230 = vld [vmem:[%s1 + $0x38] sm:$0xf]
      %v231 = vld [vmem:[%s1 + $0x3c] sm:$0xf]
      %v232 = vld [vmem:[%s1 + $0x40] sm:$0xf]
      %v233 = vld [vmem:[%s1 + $0x44] sm:$0xf]
      %v234 = vld [vmem:[%s1 + $0x48] sm:$0xf]
      %v235 = vld [vmem:[%s1 + $0x4c] sm:$0xf]
      %v236 = vld [vmem:[%s1 + $0x50] sm:$0xf]
      %v237 = vld [vmem:[%s1 + $0x54] sm:$0xf]
      %v238 = vld [vmem:[%s1 + $0x58] sm:$0xf]
      %v239 = vld [vmem:[%s1 + $0x5c] sm:$0xf]
      %v240 = vld [vmem:[%s2] sm:$0x1]
      %v242 = vlaneseq
      %v243 = vshrl.u32 %v242, 7
      %v244 = vsub.s32 0, %v243
      %v245 = vrot.slane %v240, %v244
      %v271 = vunpack.c.l.b16 %v216
      %v272 = vunpack.c.l.b16 %v217
      %v273 = vunpack.c.l.b16 %v218
      %v274 = vunpack.c.l.b16 %v219
      %v275 = vunpack.c.l.b16 %v220
      %v276 = vunpack.c.l.b16 %v221
      %v277 = vunpack.c.l.b16 %v222
      %v278 = vunpack.c.l.b16 %v223
      %v279 = vunpack.c.l.b16 %v224
      %v280 = vunpack.c.l.b16 %v225
      %v281 = vunpack.c.l.b16 %v226
      %v282 = vunpack.c.l.b16 %v227
      %v283 = vunpack.c.l.b16 %v228
      %v284 = vunpack.c.l.b16 %v229
      %v285 = vunpack.c.l.b16 %v230
      %v286 = vunpack.c.l.b16 %v231
      %v287 = vunpack.c.l.b16 %v232
      %v288 = vunpack.c.l.b16 %v233
      %v289 = vunpack.c.l.b16 %v234
      %v290 = vunpack.c.l.b16 %v235
      %v291 = vunpack.c.l.b16 %v236
      %v292 = vunpack.c.l.b16 %v237
      %v293 = vunpack.c.l.b16 %v238
      %v294 = vunpack.c.l.b16 %v239
      %v295 = vpack.c.b16 %v272, %v271
      %v296 = vpack.c.b16 %v274, %v273
      %v297 = vpack.c.b16 %v276, %v275
      %v298 = vpack.c.b16 %v278, %v277
      %v299 = vpack.c.b16 %v280, %v279
      %v300 = vpack.c.b16 %v282, %v281
      %v301 = vpack.c.b16 %v284, %v283
      %v302 = vpack.c.b16 %v286, %v285
      %v303 = vpack.c.b16 %v288, %v287
      %v304 = vpack.c.b16 %v290, %v289
      %v305 = vpack.c.b16 %v292, %v291
      %v306 = vpack.c.b16 %v294, %v293
      %v320 = vsel %vm211, %v208, 0
      %322 = vmatprep.subr.bf16.mxu0 0
      %323 = vmatpush1.bf16.msra.mxu0 %v295
      %324 = vmatprep.subr.bf16.mxu0 0
      %325 = vmatpush1.bf16.msra.mxu0 %v296
      %326 = vmatprep.subr.bf16.mxu0 0
      %327 = vmatpush1.bf16.msra.mxu0 %v297
      %328 = vmatprep.subr.bf16.mxu0 0
      %329 = vmatpush1.bf16.msra.mxu0 %v298
      %330 = vmatprep.subr.bf16.mxu0 0
      %331 = vmatpush1.bf16.msra.mxu0 %v299
      %332 = vmatprep.subr.bf16.mxu0 0
      %333 = vmatpush1.bf16.msra.mxu0 %v300
      %334 = vmatprep.subr.bf16.mxu0 0
      %335 = vmatpush1.bf16.msra.mxu0 %v301
      %336 = vmatprep.subr.bf16.mxu0 0
      %337 = vmatpush1.bf16.msra.mxu0 %v302
      %338 = vmatprep.subr.bf16.mxu0 0
      %339 = vmatpush1.bf16.msra.mxu0 %v303
      %340 = vmatprep.subr.bf16.mxu0 0
      %341 = vmatpush1.bf16.msra.mxu0 %v304
      %342 = vmatprep.subr.bf16.mxu0 0
      %343 = vmatpush1.bf16.msra.mxu0 %v305
      %344 = vmatprep.subr.bf16.mxu0 0
      %345 = vmatpush1.bf16.msra.mxu0 %v306
      %346 = vmatprep.subr.bf16.mxu0 0
      %347 = vmatpush1.bf16.msra.mxu0 0
      %348 = vmatprep.subr.bf16.mxu0 0
      %349 = vmatpush1.bf16.msra.mxu0 0
      %350 = vmatprep.subr.bf16.mxu0 0
      %351 = vmatpush1.bf16.msra.mxu0 0
      %352 = vmatprep.subr.bf16.mxu0 0
      %353 = vmatpush1.bf16.msra.mxu0 0
      %354 = vmatprep.mubr.bf16.mxu0 %v320
      %355 = vmatmul.mubr.bf16.gmra.mrb[0].mxu0 %v214
      %v356 = vpop.f32.mrb[0].mxu0
      %v357 = vadd.f32 %v245, %v356
      %v358 = vpop.f32.mrb[0].mxu0
      %v359 = vpop.f32.mrb[0].mxu0
      %v360 = vadd.f32 %v245, %v359
      %v361 = vpop.f32.mrb[0].mxu0
      %362 = vdwg.mxu0
      %363 = vst [vmem:[%s170] sm:$0xff] %v357
      %364 = vst [vmem:[%s170 + $0x8] sm:$0xff] %v360
      %p365 = scmp.lt.s32.totalorder %s14, 1
      %s366 = scalar_select %p365, %s14, 1
      %s367 = smul.addr %s366, 2
      %s368 = smul.addr %s367, 8
      %s369 = scalar_lea.vmem %s3, %s368
      // Predicated region
      $region33: #{conv3x3.1} parent=31 // pred_check
        %p370 = pneg %p100
      $region34: #{conv3x3.1} parent=31 // pred_check_branch
        %372 = sbr.rel (%p370) target = $region36
      $region35: #{conv3x3.1} parent=31 // pred_region
        _
      $region36: #{conv3x3.1} parent=31 // pred_fallthru
        _
    $region32: #{conv3x3.1} parent=5 // pred_fallthru
      _
    %p373 = scmp.le.s32.totalorder 2, %s9
    // Predicated region
    $region37: #{conv3x3.1} parent=5 // pred_check
      %p374 = pneg %p373
    $region38: #{conv3x3.1} parent=5 // pred_check_branch
      %376 = sbr.rel (%p374) target = $region40
    $region39: #{conv3x3.1} parent=5 // pred_region
      %s377 = ssub.s32 %s9, 2
      // Predicated region
      $region41: #{conv3x3.1} parent=39 // pred_check
        %p378 = pneg %p106
      $region42: #{conv3x3.1} parent=39 // pred_check_branch
        %380 = sbr.rel (%p378) target = $region44
      $region43: #{conv3x3.1} parent=39 // pred_region
        %p381 = scmp.lt.s32.totalorder %s15, 1
        %s382 = scalar_select %p381, %s15, 1
        %s383 = smul.addr %s382, 2
        %s384 = smul.addr %s383, 8
        %s385 = scalar_lea.vmem %s3, %s384
      $region44: #{conv3x3.1} parent=39 // pred_fallthru
        _
    $region40: #{conv3x3.1} parent=5 // pred_fallthru
      _
  $region6: #{conv3x3.1} parent=0 // loop_footer
    %s13 = sadd.s32 1, %s9
  $region7: #{conv3x3.1} parent=0 // loop_footer_branch
    %8 = sbr.rel target = $region3
  $region8: #{conv3x3.1} parent=0 // loop_exit
    _

</llo_original>
